<compile_context>
chip_gen: v5e
topology: v5e:2x2
jax: 0.10.0
libtpu: 0.0.40
codegen_flags: <defaults>
</compile_context>

<pallas_src>
import functools

import jax
import jax.numpy as jnp
from jax.experimental import pallas as pl
from jax.experimental.pallas import tpu as pltpu


def _round_up(x, m):
    return (x + m - 1) // m * m


def _cdiv(a, b):
    return (a + b - 1) // b


def _vmem_capacity_bytes():
    try:
        return int(pltpu.get_tpu_info().vmem_capacity_bytes)
    except Exception:
        return 64 * 1024 * 1024  # conservative (v7x per-TC)


def _num_tensorcores():
    try:
        kind = jax.devices()[0].device_kind.lower()
    except Exception:
        return 1
    # v7x has 2 TCs/chip; v4/v5p megacore also exposes 2 cores to "parallel" grid axes.
    return 2 if ("v7" in kind or "v4" in kind or "v5p" in kind) else 1


def _agg_kernel(idx_ref, emb_ref, *rest, mode, inv_m, scale_out):
    """One grid step: aggregate a (tile_n, M) block of category indices."""
    if mode == "attention":
        prob_ref, out_ref = rest
    else:
        (out_ref,) = rest

    idx = idx_ref[...]                          # (TN, M) int32
    emb = emb_ref[...]                          # (C, D_pad)
    tn, m_slots = idx.shape
    n_cat = emb.shape[0]

    # Category iota along lanes; each column slice of idx is compared against it.
    cats = jax.lax.broadcasted_iota(jnp.int32, (tn, n_cat), 1)   # (TN, C)

    if mode == "attention":
        probs = prob_ref[...]                   # (TN, M) f32, softmax over M (hoisted)
        weights = probs[:, 0:1] * (idx[:, 0:1] == cats).astype(jnp.float32)
        for m in range(1, m_slots):
            weights = weights + probs[:, m:m + 1] * (
                idx[:, m:m + 1] == cats).astype(jnp.float32)
    else:
        # weights[n, c] = #occurrences of c in row n  (optionally / M)
        weights = (idx[:, 0:1] == cats).astype(jnp.float32)
        for m in range(1, m_slots):
            weights = weights + (idx[:, m:m + 1] == cats).astype(jnp.float32)
        if mode == "mean" and not scale_out:
            weights = weights * inv_m

    # Single fused gather+aggregate matmul on the MXU (f32 accumulation).
    out = jnp.dot(weights.astype(emb.dtype), emb,
                  preferred_element_type=jnp.float32)            # (TN, D_pad)
    if mode == "mean" and scale_out:
        out = out * inv_m
    out_ref[...] = out.astype(out_ref.dtype)


def multi_meta_aggregator(meta_indices, emb_table, attn_w=None, attn_b=None,
                          aggregation="mean", tile_n=256, compute_dtype=None):
    """meta_indices: (B, S, M) int -> (B, S, D) float32."""
    if aggregation not in ("mean", "sum", "attention"):
        raise ValueError(f"Unsupported aggregation method: {aggregation}")

    B, S, M = meta_indices.shape
    C, D = emb_table.shape
    N = B * S

    if compute_dtype is None:
        compute_dtype = emb_table.dtype
    compute_dtype = jnp.dtype(compute_dtype)

    idx2d = meta_indices.reshape(N, M).astype(jnp.int32)

    # --- attention: hoist Linear(D,1) AND the softmax over M into the wrapper ---
    slot_probs = None
    if aggregation == "attention":
        cat_logits = (jnp.dot(emb_table.astype(jnp.float32),
                              attn_w.astype(jnp.float32).reshape(D, 1))
                      + jnp.asarray(attn_b, jnp.float32).reshape(1, 1)).reshape(C)
        slot_probs = jax.nn.softmax(cat_logits[idx2d], axis=-1).astype(jnp.float32)  # (N, M)

    # --- lane-dense output: pad D to a multiple of 128 (zero columns) ---
    D_pad = _round_up(D, 128)
    emb_c = emb_table.astype(compute_dtype)
    if D_pad != D:
        emb_c = jnp.pad(emb_c, ((0, 0), (0, D_pad - D)))

    # --- generation-aware VMEM budget / limit ---
    cap = _vmem_capacity_bytes()
    if cap >= 96 * 1024 * 1024:            # v5e / v6e: 128 MiB physical VMEM
        vmem_limit = 100 * 1024 * 1024
        vmem_budget = 80 * 1024 * 1024
    else:                                  # v7x: 64 MiB per TensorCore
        vmem_limit = 44 * 1024 * 1024
        vmem_budget = 34 * 1024 * 1024

    emb_bytes = C * D_pad * emb_c.dtype.itemsize   # resident table: single copy
    c_lanes = _round_up(C, 128)
    m_lanes = _round_up(M, 128)

    def _vmem_est(t):
        est = 2 * t * m_lanes * 4                  # index tile, double-buffered (lane-padded)
        est += emb_bytes                           # table, VMEM-resident (single-buffered)
        est += 2 * t * D_pad * 4                   # output tile, double-buffered
        n_tmp = 2                                  # live (t, C_pad) temporaries
        if aggregation == "attention":
            est += 2 * t * m_lanes * 4             # slot-prob tile, double-buffered
            n_tmp = 3
        est += n_tmp * t * c_lanes * 4
        return est

    # --- tile_n selection: big tiles, balanced grid, minimal padding, within VMEM ---
    tn = max(8, min(_round_up(int(tile_n), 8), _round_up(N, 8)))
    min_steps = 2 if (_num_tensorcores() >= 2 and N > 8) else 1
    tn = min(tn, max(8, _round_up(_cdiv(N, min_steps), 8)))
    while tn > 8 and _vmem_est(tn) > vmem_budget:
        tn = max(8, _round_up(tn // 2, 8))
    steps = max(min_steps, _cdiv(N, tn))
    tn = max(8, _round_up(_cdiv(N, steps), 8))     # minimize row padding
    Np = steps * tn

    pad_rows = Np - N
    if pad_rows:
        # padded rows use padding_idx=0; they are sliced off below.
        idx2d = jnp.concatenate([idx2d, jnp.zeros((pad_rows, M), jnp.int32)], axis=0)
        if slot_probs is not None:
            slot_probs = jnp.concatenate(
                [slot_probs, jnp.zeros((pad_rows, M), jnp.float32)], axis=0)

    grid = (Np // tn,)

    kernel = functools.partial(_agg_kernel, mode=aggregation, inv_m=1.0 / M,
                               scale_out=bool(D_pad < C))

    flops = int(2 * Np * C * D_pad + 3 * Np * M * C)
    bytes_accessed = int(Np * M * 4 + emb_bytes + Np * D_pad * 4)
    if aggregation == "attention":
        bytes_accessed += int(Np * M * 4)

    def _call(resident_table):
        if resident_table:
            # Whole-array VMEM residence: single-buffered (no 2x constant-index copies).
            emb_spec = pl.BlockSpec(memory_space=pltpu.MemorySpace.VMEM)
        else:
            emb_spec = pl.BlockSpec((C, D_pad), lambda i: (0, 0))
        in_specs = [pl.BlockSpec((tn, M), lambda i: (i, 0)), emb_spec]
        args = [idx2d, emb_c]
        if aggregation == "attention":
            in_specs.append(pl.BlockSpec((tn, M), lambda i: (i, 0)))
            args.append(slot_probs)
        return pl.pallas_call(
            kernel,
            out_shape=jax.ShapeDtypeStruct((Np, D_pad), jnp.float32),
            grid_spec=pltpu.PrefetchScalarGridSpec(
                num_scalar_prefetch=0,
                grid=grid,
                in_specs=in_specs,
                out_specs=pl.BlockSpec((tn, D_pad), lambda i: (i, 0)),
            ),
            compiler_params=pltpu.CompilerParams(
                dimension_semantics=("parallel",),
                vmem_limit_bytes=vmem_limit,
            ),
            cost_estimate=pl.CostEstimate(
                flops=flops, transcendentals=0, bytes_accessed=bytes_accessed),
        )(*args)

    try:
        out = _call(resident_table=True)
    except Exception:
        # Fallback: blocked constant-index table spec if whole-array VMEM operands are
        # not accepted by this jax/libtpu version.
        out = _call(resident_table=False)

    return out[:N, :D].reshape(B, S, D)


def _reference(meta_indices, emb_table, attn_w, attn_b, aggregation):
    emb = emb_table[meta_indices]                               # (B, S, M, D)
    if aggregation == "mean":
        return emb.mean(axis=-2)
    if aggregation == "sum":
        return emb.sum(axis=-2)
    logits = jnp.einsum("bsmd,do->bsmo", emb, attn_w) + attn_b[0, 0]
    attn = jax.nn.softmax(logits, axis=-2)
    return jnp.sum(emb * attn, axis=-2)


if __name__ == "__main__":
    # Small shapes consistent with the module's forward.
    B, S, M = 2, 8, 4          # batch, sequence_length, num_meta_per_track
    num_category, D = 16, 32   # num_category, embedding_dim
    padding_idx = 0

    key = jax.random.PRNGKey(0)
    k_emb, k_idx, k_w, k_b = jax.random.split(key, 4)

    # Embedding weights: trunc_normal_, padding row zeroed (nn.Embedding padding_idx).
    emb_table = jax.random.truncated_normal(
        k_emb, -2.0, 2.0, (num_category, D), dtype=jnp.float32)
    emb_table = emb_table.at[padding_idx].set(0.0)

    # Attention Linear(D, 1): PyTorch-default-style uniform init, deterministic.
    bound = 1.0 / jnp.sqrt(jnp.float32(D))
    attn_w = jax.random.uniform(k_w, (D, 1), minval=-bound, maxval=bound,
                                dtype=jnp.float32)
    attn_b = jax.random.uniform(k_b, (1, 1), minval=-bound, maxval=bound,
                                dtype=jnp.float32)

    # Meta indices, including some padding_idx entries.
    meta_indices = jax.random.randint(k_idx, (B, S, M), 0, num_category,
                                      dtype=jnp.int32)

    # Exact f32 path (table dtype) — tight tolerances.
    for mode in ("mean", "sum", "attention"):
        out = jax.block_until_ready(
            multi_meta_aggregator(meta_indices, emb_table, attn_w, attn_b,
                                  aggregation=mode))
        ref = _reference(meta_indices, emb_table, attn_w, attn_b, mode)
        assert out.shape == (B, S, D)
        assert jnp.allclose(out, ref, atol=1e-4, rtol=1e-4), f"mismatch in {mode}"

    # bf16 MXU path (f32 accumulation) — looser tolerance.
    out_bf16 = jax.block_until_ready(
        multi_meta_aggregator(meta_indices, emb_table, attn_w, attn_b,
                              aggregation="sum", compute_dtype=jnp.bfloat16))
    ref_sum = _reference(meta_indices, emb_table, attn_w, attn_b, "sum")
    assert jnp.allclose(out_bf16, ref_sum, atol=5e-2, rtol=5e-2), "mismatch in bf16 sum"

    print("KERNEL_OK")
</pallas_src>

<mosaic_0001>
module attributes {stable_mosaic.version = 11 : i64} {
  func.func @_agg_kernel(%arg0: i32, %arg1: memref<16x4xi32, #tpu.memory_space<vmem>>, %arg2: memref<16x128xf32, #tpu.memory_space<vmem>>, %arg3: memref<16x128xf32, #tpu.memory_space<vmem>>) attributes {dimension_semantics = [#tpu.dimension_semantics<parallel>], iteration_bounds = array<i64: 1>, scalar_prefetch = 0 : i64, scratch_operands = 0 : i64, tpu.core_type = #tpu.core_type<tc>, window_params = [{transform_indices = @transform_0, window_bounds = array<i64: 16, 4>}, {pipeline_mode = #tpu.pipeline_mode<synchronous>, transform_indices = @transform_1, window_bounds = array<i64: 16, 128>}, {transform_indices = @transform_2, window_bounds = array<i64: 16, 128>}]} {
    %c0 = arith.constant 0 : index
    %c0_0 = arith.constant 0 : index
    %0 = vector.load %arg1[%c0, %c0_0] : memref<16x4xi32, #tpu.memory_space<vmem>>, vector<16x4xi32>
    %c0_1 = arith.constant 0 : index
    %c0_2 = arith.constant 0 : index
    %1 = vector.load %arg2[%c0_1, %c0_2] : memref<16x128xf32, #tpu.memory_space<vmem>>, vector<16x128xf32>
    %2 = tpu.iota {dimensions = array<i32: 1>} : vector<16x16xi32>
    %3 = vector.extract_strided_slice %0 {offsets = [0, 0], sizes = [16, 1], strides = [1, 1]} : vector<16x4xi32> to vector<16x1xi32>
    %4 = vector.broadcast %3 : vector<16x1xi32> to vector<16x16xi32>
    %5 = arith.cmpi eq, %4, %2 : vector<16x16xi32>
    %6 = arith.extui %5 : vector<16x16xi1> to vector<16x16xi32>
    %7 = arith.sitofp %6 : vector<16x16xi32> to vector<16x16xf32>
    %8 = vector.extract_strided_slice %0 {offsets = [0, 1], sizes = [16, 1], strides = [1, 1]} : vector<16x4xi32> to vector<16x1xi32>
    %9 = vector.broadcast %8 : vector<16x1xi32> to vector<16x16xi32>
    %10 = arith.cmpi eq, %9, %2 : vector<16x16xi32>
    %11 = arith.extui %10 : vector<16x16xi1> to vector<16x16xi32>
    %12 = arith.sitofp %11 : vector<16x16xi32> to vector<16x16xf32>
    %13 = arith.addf %7, %12 : vector<16x16xf32>
    %14 = vector.extract_strided_slice %0 {offsets = [0, 2], sizes = [16, 1], strides = [1, 1]} : vector<16x4xi32> to vector<16x1xi32>
    %15 = vector.broadcast %14 : vector<16x1xi32> to vector<16x16xi32>
    %16 = arith.cmpi eq, %15, %2 : vector<16x16xi32>
    %17 = arith.extui %16 : vector<16x16xi1> to vector<16x16xi32>
    %18 = arith.sitofp %17 : vector<16x16xi32> to vector<16x16xf32>
    %19 = arith.addf %13, %18 : vector<16x16xf32>
    %20 = vector.extract_strided_slice %0 {offsets = [0, 3], sizes = [16, 1], strides = [1, 1]} : vector<16x4xi32> to vector<16x1xi32>
    %21 = vector.broadcast %20 : vector<16x1xi32> to vector<16x16xi32>
    %22 = arith.cmpi eq, %21, %2 : vector<16x16xi32>
    %23 = arith.extui %22 : vector<16x16xi1> to vector<16x16xi32>
    %24 = arith.sitofp %23 : vector<16x16xi32> to vector<16x16xf32>
    %25 = arith.addf %19, %24 : vector<16x16xf32>
    %cst = arith.constant 2.500000e-01 : f32
    %26 = vector.broadcast %cst : f32 to vector<16x16xf32>
    %27 = arith.mulf %25, %26 : vector<16x16xf32>
    %cst_3 = arith.constant dense<0.000000e+00> : vector<16x128xf32>
    %28 = tpu.matmul %27, %1, %cst_3 {dimension_numbers = #tpu.dot_dimension_numbers<[1], [0], [0], [1], [0, 0, 1, 1], [], []>} : vector<16x16xf32>, vector<16x128xf32>, vector<16x128xf32> -> vector<16x128xf32>
    %c0_4 = arith.constant 0 : index
    %c0_5 = arith.constant 0 : index
    %29 = vector.load %arg3[%c0_4, %c0_5] : memref<16x128xf32, #tpu.memory_space<vmem>>, vector<16x128xf32>
    tpu.vector_store %arg3[%c0_4, %c0_5], %28 {strides = array<i32>} : memref<16x128xf32, #tpu.memory_space<vmem>>, vector<16x128xf32>,
    return
  }
  func.func @transform_0(%arg0: i32) -> (i32, i32) {
    %c0_i32 = arith.constant 0 : i32
    %c0_i32_0 = arith.constant 0 : i32
    return %arg0, %c0_i32 : i32, i32
  }
  func.func @transform_1(%arg0: i32) -> (i32, i32) {
    %c0_i32 = arith.constant 0 : i32
    %c0_i32_0 = arith.constant 0 : i32
    %c0_i32_1 = arith.constant 0 : i32
    return %c0_i32, %c0_i32_0 : i32, i32
  }
  func.func @transform_2(%arg0: i32) -> (i32, i32) {
    %c0_i32 = arith.constant 0 : i32
    %c0_i32_0 = arith.constant 0 : i32
    return %arg0, %c0_i32 : i32, i32
  }
}

module attributes {stable_mosaic.version = 11 : i64} {
  func.func @_agg_kernel(%arg0: i32, %arg1: memref<16x4xi32, #tpu.memory_space<vmem>>, %arg2: memref<16x128xf32, #tpu.memory_space<vmem>>, %arg3: memref<16x128xf32, #tpu.memory_space<vmem>>) attributes {dimension_semantics = [#tpu.dimension_semantics<parallel>], iteration_bounds = array<i64: 1>, scalar_prefetch = 0 : i64, scratch_operands = 0 : i64, tpu.core_type = #tpu.core_type<tc>, window_params = [{transform_indices = @transform_0, window_bounds = array<i64: 16, 4>}, {pipeline_mode = #tpu.pipeline_mode<synchronous>, transform_indices = @transform_1, window_bounds = array<i64: 16, 128>}, {transform_indices = @transform_2, window_bounds = array<i64: 16, 128>}]} {
    %c0 = arith.constant 0 : index
    %c0_0 = arith.constant 0 : index
    %0 = vector.load %arg1[%c0, %c0_0] : memref<16x4xi32, #tpu.memory_space<vmem>>, vector<16x4xi32>
    %c0_1 = arith.constant 0 : index
    %c0_2 = arith.constant 0 : index
    %1 = vector.load %arg2[%c0_1, %c0_2] : memref<16x128xf32, #tpu.memory_space<vmem>>, vector<16x128xf32>
    %2 = tpu.iota {dimensions = array<i32: 1>} : vector<16x16xi32>
    %3 = vector.extract_strided_slice %0 {offsets = [0, 0], sizes = [16, 1], strides = [1, 1]} : vector<16x4xi32> to vector<16x1xi32>
    %4 = vector.broadcast %3 : vector<16x1xi32> to vector<16x16xi32>
    %5 = arith.cmpi eq, %4, %2 : vector<16x16xi32>
    %6 = arith.extui %5 : vector<16x16xi1> to vector<16x16xi32>
    %7 = arith.sitofp %6 : vector<16x16xi32> to vector<16x16xf32>
    %8 = vector.extract_strided_slice %0 {offsets = [0, 1], sizes = [16, 1], strides = [1, 1]} : vector<16x4xi32> to vector<16x1xi32>
    %9 = vector.broadcast %8 : vector<16x1xi32> to vector<16x16xi32>
    %10 = arith.cmpi eq, %9, %2 : vector<16x16xi32>
    %11 = arith.extui %10 : vector<16x16xi1> to vector<16x16xi32>
    %12 = arith.sitofp %11 : vector<16x16xi32> to vector<16x16xf32>
    %13 = arith.addf %7, %12 : vector<16x16xf32>
    %14 = vector.extract_strided_slice %0 {offsets = [0, 2], sizes = [16, 1], strides = [1, 1]} : vector<16x4xi32> to vector<16x1xi32>
    %15 = vector.broadcast %14 : vector<16x1xi32> to vector<16x16xi32>
    %16 = arith.cmpi eq, %15, %2 : vector<16x16xi32>
    %17 = arith.extui %16 : vector<16x16xi1> to vector<16x16xi32>
    %18 = arith.sitofp %17 : vector<16x16xi32> to vector<16x16xf32>
    %19 = arith.addf %13, %18 : vector<16x16xf32>
    %20 = vector.extract_strided_slice %0 {offsets = [0, 3], sizes = [16, 1], strides = [1, 1]} : vector<16x4xi32> to vector<16x1xi32>
    %21 = vector.broadcast %20 : vector<16x1xi32> to vector<16x16xi32>
    %22 = arith.cmpi eq, %21, %2 : vector<16x16xi32>
    %23 = arith.extui %22 : vector<16x16xi1> to vector<16x16xi32>
    %24 = arith.sitofp %23 : vector<16x16xi32> to vector<16x16xf32>
    %25 = arith.addf %19, %24 : vector<16x16xf32>
    %cst = arith.constant 2.500000e-01 : f32
    %26 = vector.broadcast %cst : f32 to vector<16x16xf32>
    %27 = arith.mulf %25, %26 : vector<16x16xf32>
    %cst_3 = arith.constant dense<0.000000e+00> : vector<16x128xf32>
    %28 = tpu.matmul %27, %1, %cst_3 {dimension_numbers = #tpu.dot_dimension_numbers<[1], [0], [0], [1], [0, 0, 1, 1], [], []>} : vector<16x16xf32>, vector<16x128xf32>, vector<16x128xf32> -> vector<16x128xf32>
    %c0_4 = arith.constant 0 : index
    %c0_5 = arith.constant 0 : index
    %29 = vector.load %arg3[%c0_4, %c0_5] : memref<16x128xf32, #tpu.memory_space<vmem>>, vector<16x128xf32>
    tpu.vector_store %arg3[%c0_4, %c0_5], %28 {strides = array<i32>} : memref<16x128xf32, #tpu.memory_space<vmem>>, vector<16x128xf32>,
    return
  }
  func.func @transform_0(%arg0: i32) -> (i32, i32) {
    %c0_i32 = arith.constant 0 : i32
    %c0_i32_0 = arith.constant 0 : i32
    return %arg0, %c0_i32 : i32, i32
  }
  func.func @transform_1(%arg0: i32) -> (i32, i32) {
    %c0_i32 = arith.constant 0 : i32
    %c0_i32_0 = arith.constant 0 : i32
    %c0_i32_1 = arith.constant 0 : i32
    return %c0_i32, %c0_i32_0 : i32, i32
  }
  func.func @transform_2(%arg0: i32) -> (i32, i32) {
    %c0_i32 = arith.constant 0 : i32
    %c0_i32_0 = arith.constant 0 : i32
    return %arg0, %c0_i32 : i32, i32
  }
}

</mosaic_0001>

<llo_original>
// kernel: tpu_custom_call.1
$region0: #{tpu_custom_call.1}
  #allocation0 [shape = 'u32[]', space=smem, size = 0x4, offset = 0x4, fixed_abs, tag = 'smem constant byte address 0x4 - core index']
  #allocation1 [shape = 'u32[72,128]{1,0:T(1,128)}', space=vmem, size = 0x9000, scoped, tag = 'internal scratch']
  %s0 = inlined_call_operand.vmem [shape: s32[16,4], index: 0, kind: input, shape index: {}]
  %s1 = inlined_call_operand.vmem [shape: f32[16,128], index: 1, kind: input, shape index: {}]
  %s2 = inlined_call_operand.hbm [shape: f32[16,128], index: 2, kind: output, shape index: {}]
  %s3 = sld [smem:[#allocation0]]
  $region18: #{tpu_custom_call.1} parent=0
    _
  %s5 = ssub.s32 1, %s3
  %s6 = scalar_select 0, %s5, %s3
  $region1: #{tpu_custom_call.1} parent=0
    #allocation2 [shape = 'u8[8192]{0}', space=vmem, size = 0x2000, scoped, tag = 'output window, operand 0, single buffered']
    #allocation3 [shape = 's32[1]{0}', space=sflag, size = 0x4, scoped, tag = 'scoped memory for tpu_custom_call.1']
    %7 = vsyncpa [#allocation3], 0
    // Predicated region
    $region2: #{tpu_custom_call.1} parent=1 // pred_check
      _
    $region3: #{tpu_custom_call.1} parent=1 // pred_check_branch
      %9 = sbr.rel (0) target = $region5
    $region4: #{tpu_custom_call.1} parent=1 // pred_region
      _
    $region5: #{tpu_custom_call.1} parent=1 // pred_fallthru
      _
    // Predicated region
    $region6: #{tpu_custom_call.1} parent=1 // pred_check
      _
    $region7: #{tpu_custom_call.1} parent=1 // pred_check_branch
      %11 = sbr.rel (0) target = $region9
    $region8: #{tpu_custom_call.1} parent=1 // pred_region
      _
    $region9: #{tpu_custom_call.1} parent=1 // pred_fallthru
      _
    %v12 = vld [vmem:[%s0] sm:$0xff]
    %v13 = vld [vmem:[%s0 + $0x8] sm:$0xff]
    %v14 = vld [vmem:[%s1] sm:$0xff]
    %v15 = vld [vmem:[%s1 + $0x8] sm:$0xff]
    %v16 = vlaneseq
    %v17 = vand.u32 %v16, 127
    %18 = vset.pattern.permute.xlu0 0
    %19 = vperm.xlu0 %18, %v12
    %v20 = vpop.permute.xlu0 %19
    %21 = vset.pattern.permute.xlu0 0
    %22 = vperm.xlu0 %21, %v13
    %v23 = vpop.permute.xlu0 %22
    %vm24 = vcmp.eq.s32.totalorder %v20, %v17
    %vm25 = vcmp.eq.s32.totalorder %v23, %v17
    %v26 = vsel %vm24, 1, 0
    %v27 = vsel %vm25, 1, 0
    %v28 = vcvt.s32.f32 %v26
    %v29 = vcvt.s32.f32 %v27
    %30 = vset.pattern.permute.xlu0 1
    %31 = vperm.xlu0 %30, %v12
    %v32 = vpop.permute.xlu0 %31
    %33 = vset.pattern.permute.xlu0 1
    %34 = vperm.xlu0 %33, %v13
    %v35 = vpop.permute.xlu0 %34
    %vm36 = vcmp.eq.s32.totalorder %v32, %v17
    %vm37 = vcmp.eq.s32.totalorder %v35, %v17
    %v38 = vsel %vm36, 1, 0
    %v39 = vsel %vm37, 1, 0
    %v40 = vcvt.s32.f32 %v38
    %v41 = vcvt.s32.f32 %v39
    %v42 = vadd.f32 %v28, %v40
    %v43 = vadd.f32 %v29, %v41
    %44 = vset.pattern.permute.xlu0 2
    %45 = vperm.xlu0 %44, %v12
    %v46 = vpop.permute.xlu0 %45
    %47 = vset.pattern.permute.xlu0 2
    %48 = vperm.xlu0 %47, %v13
    %v49 = vpop.permute.xlu0 %48
    %vm50 = vcmp.eq.s32.totalorder %v46, %v17
    %vm51 = vcmp.eq.s32.totalorder %v49, %v17
    %v52 = vsel %vm50, 1, 0
    %v53 = vsel %vm51, 1, 0
    %v54 = vcvt.s32.f32 %v52
    %v55 = vcvt.s32.f32 %v53
    %v56 = vadd.f32 %v42, %v54
    %v57 = vadd.f32 %v43, %v55
    %58 = vset.pattern.permute.xlu0 3
    %59 = vperm.xlu0 %58, %v12
    %v60 = vpop.permute.xlu0 %59
    %61 = vset.pattern.permute.xlu0 3
    %62 = vperm.xlu0 %61, %v13
    %v63 = vpop.permute.xlu0 %62
    %vm64 = vcmp.eq.s32.totalorder %v60, %v17
    %vm65 = vcmp.eq.s32.totalorder %v63, %v17
    %v66 = vsel %vm64, 1, 0
    %v67 = vsel %vm65, 1, 0
    %v68 = vcvt.s32.f32 %v66
    %v69 = vcvt.s32.f32 %v67
    %v70 = vadd.f32 %v56, %v68
    %v71 = vadd.f32 %v57, %v69
    %v72 = vmul.f32 %v70, 0.25
    %v73 = vmul.f32 %v71, 0.25
    %vm74 = vcmask 130048
    %v76 = vsel %vm74, %v72, 0
    %v79 = vsel %vm74, %v73, 0
    %81 = vmatpush.msra.mxu0 0.0
    %82 = vmatpush.msra.mxu0 0.0
    %83 = vmatpush.msra.mxu0 0.0
    %84 = vmatpush.msra.mxu0 0.0
    %85 = vmatpush.msra.mxu0 0.0
    %86 = vmatpush.msra.mxu0 0.0
    %87 = vmatpush.msra.mxu0 0.0
    %88 = vmatpush.msra.mxu0 0.0
    %89 = vmatpush.msra.mxu0 0.0
    %90 = vmatpush.msra.mxu0 0.0
    %91 = vmatpush.msra.mxu0 0.0
    %92 = vmatpush.msra.mxu0 0.0
    %93 = vmatpush.msra.mxu0 0.0
    %94 = vmatpush.msra.mxu0 0.0
    %95 = vmatpush.msra.mxu0 %v15
    %96 = vmatpush.msra.mxu0 %v14
    %97 = vmatmul.f32.gmra.mxu0 %v76
    %v98 = vpop.f32.mrf.mxu0
    %v99 = vadd.f32 0.0, %v98
    %100 = vmatmul.f32.gmra.mxu0 %v79
    %v101 = vpop.f32.mrf.mxu0
    %v102 = vadd.f32 0.0, %v101
    %103 = vdwg.mxu0
    %104 = vst [vmem:[#allocation2] sm:$0xff] %v99
    %105 = vst [vmem:[#allocation2 + $0x8] sm:$0xff] %v102
    // Predicated region
    $region10: #{tpu_custom_call.1} parent=1 // pred_check
      _
    $region11: #{tpu_custom_call.1} parent=1 // pred_check_branch
      %107 = sbr.rel (0) target = $region13
    $region12: #{tpu_custom_call.1} parent=1 // pred_region
      %109 = vsyncadd [#allocation3], 0
      %s110 = sshll.u32 [#allocation2], 4
      %s111 = int_to_ptr.vmem [resolvable:$true] %s110
      %s112 = sshll.u32 %s2, 4
      %s113 = int_to_ptr.hbm [resolvable:$true] %s112
      %118 = dma.vmem_to_hbm [thread:$0]  %s111, 256, %s113, [#allocation3], 128, 128, 8
    $region13: #{tpu_custom_call.1} parent=1 // pred_fallthru
      _
    // Predicated region
    $region14: #{tpu_custom_call.1} parent=1 // pred_check
      _
    $region15: #{tpu_custom_call.1} parent=1 // pred_check_branch
      %120 = sbr.rel (0) target = $region17
    $region16: #{tpu_custom_call.1} parent=1 // pred_region
      %122 = dma.done [#allocation3], 256
    $region17: #{tpu_custom_call.1} parent=1 // pred_fallthru
      _
    %123 = vsyncpa [#allocation3], 1

// kernel: tpu_custom_call.1
$region0: #{tpu_custom_call.1}
  #allocation0 [shape = 'u32[]', space=smem, size = 0x4, offset = 0x4, fixed_abs, tag = 'smem constant byte address 0x4 - core index']
  #allocation1 [shape = 'u32[72,128]{1,0:T(1,128)}', space=vmem, size = 0x9000, scoped, tag = 'internal scratch']
  %s0 = inlined_call_operand.vmem [shape: s32[16,4], index: 0, kind: input, shape index: {}]
  %s1 = inlined_call_operand.vmem [shape: f32[16,128], index: 1, kind: input, shape index: {}]
  %s2 = inlined_call_operand.hbm [shape: f32[16,128], index: 2, kind: output, shape index: {}]
  %s3 = sld [smem:[#allocation0]]
  $region18: #{tpu_custom_call.1} parent=0
    _
  %s5 = ssub.s32 1, %s3
  %s6 = scalar_select 0, %s5, %s3
  $region1: #{tpu_custom_call.1} parent=0
    #allocation2 [shape = 'u8[8192]{0}', space=vmem, size = 0x2000, scoped, tag = 'output window, operand 0, single buffered']
    #allocation3 [shape = 's32[1]{0}', space=sflag, size = 0x4, scoped, tag = 'scoped memory for tpu_custom_call.1']
    %7 = vsyncpa [#allocation3], 0
    // Predicated region
    $region2: #{tpu_custom_call.1} parent=1 // pred_check
      _
    $region3: #{tpu_custom_call.1} parent=1 // pred_check_branch
      %9 = sbr.rel (0) target = $region5
    $region4: #{tpu_custom_call.1} parent=1 // pred_region
      _
    $region5: #{tpu_custom_call.1} parent=1 // pred_fallthru
      _
    // Predicated region
    $region6: #{tpu_custom_call.1} parent=1 // pred_check
      _
    $region7: #{tpu_custom_call.1} parent=1 // pred_check_branch
      %11 = sbr.rel (0) target = $region9
    $region8: #{tpu_custom_call.1} parent=1 // pred_region
      _
    $region9: #{tpu_custom_call.1} parent=1 // pred_fallthru
      _
    %v12 = vld [vmem:[%s0] sm:$0xff]
    %v13 = vld [vmem:[%s0 + $0x8] sm:$0xff]
    %v14 = vld [vmem:[%s1] sm:$0xff]
    %v15 = vld [vmem:[%s1 + $0x8] sm:$0xff]
    %v16 = vlaneseq
    %v17 = vand.u32 %v16, 127
    %18 = vset.pattern.permute.xlu0 0
    %19 = vperm.xlu0 %18, %v12
    %v20 = vpop.permute.xlu0 %19
    %21 = vset.pattern.permute.xlu0 0
    %22 = vperm.xlu0 %21, %v13
    %v23 = vpop.permute.xlu0 %22
    %vm24 = vcmp.eq.s32.totalorder %v20, %v17
    %vm25 = vcmp.eq.s32.totalorder %v23, %v17
    %v26 = vsel %vm24, 1, 0
    %v27 = vsel %vm25, 1, 0
    %v28 = vcvt.s32.f32 %v26
    %v29 = vcvt.s32.f32 %v27
    %30 = vset.pattern.permute.xlu0 1
    %31 = vperm.xlu0 %30, %v12
    %v32 = vpop.permute.xlu0 %31
    %33 = vset.pattern.permute.xlu0 1
    %34 = vperm.xlu0 %33, %v13
    %v35 = vpop.permute.xlu0 %34
    %vm36 = vcmp.eq.s32.totalorder %v32, %v17
    %vm37 = vcmp.eq.s32.totalorder %v35, %v17
    %v38 = vsel %vm36, 1, 0
    %v39 = vsel %vm37, 1, 0
    %v40 = vcvt.s32.f32 %v38
    %v41 = vcvt.s32.f32 %v39
    %v42 = vadd.f32 %v28, %v40
    %v43 = vadd.f32 %v29, %v41
    %44 = vset.pattern.permute.xlu0 2
    %45 = vperm.xlu0 %44, %v12
    %v46 = vpop.permute.xlu0 %45
    %47 = vset.pattern.permute.xlu0 2
    %48 = vperm.xlu0 %47, %v13
    %v49 = vpop.permute.xlu0 %48
    %vm50 = vcmp.eq.s32.totalorder %v46, %v17
    %vm51 = vcmp.eq.s32.totalorder %v49, %v17
    %v52 = vsel %vm50, 1, 0
    %v53 = vsel %vm51, 1, 0
    %v54 = vcvt.s32.f32 %v52
    %v55 = vcvt.s32.f32 %v53
    %v56 = vadd.f32 %v42, %v54
    %v57 = vadd.f32 %v43, %v55
    %58 = vset.pattern.permute.xlu0 3
    %59 = vperm.xlu0 %58, %v12
    %v60 = vpop.permute.xlu0 %59
    %61 = vset.pattern.permute.xlu0 3
    %62 = vperm.xlu0 %61, %v13
    %v63 = vpop.permute.xlu0 %62
    %vm64 = vcmp.eq.s32.totalorder %v60, %v17
    %vm65 = vcmp.eq.s32.totalorder %v63, %v17
    %v66 = vsel %vm64, 1, 0
    %v67 = vsel %vm65, 1, 0
    %v68 = vcvt.s32.f32 %v66
    %v69 = vcvt.s32.f32 %v67
    %v70 = vadd.f32 %v56, %v68
    %v71 = vadd.f32 %v57, %v69
    %v72 = vmul.f32 %v70, 0.25
    %v73 = vmul.f32 %v71, 0.25
    %vm74 = vcmask 130048
    %v76 = vsel %vm74, %v72, 0
    %v79 = vsel %vm74, %v73, 0
    %81 = vmatpush.msra.mxu0 0.0
    %82 = vmatpush.msra.mxu0 0.0
    %83 = vmatpush.msra.mxu0 0.0
    %84 = vmatpush.msra.mxu0 0.0
    %85 = vmatpush.msra.mxu0 0.0
    %86 = vmatpush.msra.mxu0 0.0
    %87 = vmatpush.msra.mxu0 0.0
    %88 = vmatpush.msra.mxu0 0.0
    %89 = vmatpush.msra.mxu0 0.0
    %90 = vmatpush.msra.mxu0 0.0
    %91 = vmatpush.msra.mxu0 0.0
    %92 = vmatpush.msra.mxu0 0.0
    %93 = vmatpush.msra.mxu0 0.0
    %94 = vmatpush.msra.mxu0 0.0
    %95 = vmatpush.msra.mxu0 %v15
    %96 = vmatpush.msra.mxu0 %v14
    %97 = vmatmul.f32.gmra.mxu0 %v76
    %v98 = vpop.f32.mrf.mxu0
    %v99 = vadd.f32 0.0, %v98
    %100 = vmatmul.f32.gmra.mxu0 %v79
    %v101 = vpop.f32.mrf.mxu0
    %v102 = vadd.f32 0.0, %v101
    %103 = vdwg.mxu0
    %104 = vst [vmem:[#allocation2] sm:$0xff] %v99
    %105 = vst [vmem:[#allocation2 + $0x8] sm:$0xff] %v102
    // Predicated region
    $region10: #{tpu_custom_call.1} parent=1 // pred_check
      _
    $region11: #{tpu_custom_call.1} parent=1 // pred_check_branch
      %107 = sbr.rel (0) target = $region13
    $region12: #{tpu_custom_call.1} parent=1 // pred_region
      %109 = vsyncadd [#allocation3], 0
      %s110 = sshll.u32 [#allocation2], 4
      %s111 = int_to_ptr.vmem [resolvable:$true] %s110
      %s112 = sshll.u32 %s2, 4
      %s113 = int_to_ptr.hbm [resolvable:$true] %s112
      %118 = dma.vmem_to_hbm [thread:$0]  %s111, 256, %s113, [#allocation3], 128, 128, 8
    $region13: #{tpu_custom_call.1} parent=1 // pred_fallthru
      _
    // Predicated region
    $region14: #{tpu_custom_call.1} parent=1 // pred_check
      _
    $region15: #{tpu_custom_call.1} parent=1 // pred_check_branch
      %120 = sbr.rel (0) target = $region17
    $region16: #{tpu_custom_call.1} parent=1 // pred_region
      %122 = dma.done [#allocation3], 256
    $region17: #{tpu_custom_call.1} parent=1 // pred_fallthru
      _
    %123 = vsyncpa [#allocation3], 1

</llo_original>
